<compile_context>
chip_gen: v7x
topology: tpu7x:2x2x1
jax: 0.10.0
libtpu: 0.0.40
codegen_flags: <defaults>
</compile_context>

<pallas_src>
import jax
import jax.numpy as jnp
from jax.experimental import pallas as pl
from jax.experimental.pallas import tpu as pltpu

EPS = 1e-5
NEG_SLOPE = 0.01


def _round_up(a, m):
    return (a + m - 1) // m * m


# ---------------------------------------------------------------------------
# Hardware probe: VMEM capacity, TensorCores per chip, MXU alignment.
# ---------------------------------------------------------------------------
def _tpu_info():
    kind = ""
    try:
        kind = jax.devices()[0].device_kind.lower()
    except Exception:
        pass
    is_v7 = "7" in kind
    is_v5e = ("v5 lite" in kind) or ("v5e" in kind) or ("v5litepod" in kind)

    vmem_bytes = None
    try:
        vmem_bytes = int(pltpu.get_tpu_info().vmem_capacity_bytes)
    except Exception:
        vmem_bytes = None
    if not vmem_bytes or vmem_bytes <= 0:
        vmem_bytes = (64 << 20) if is_v7 else (128 << 20)

    num_tc = 2 if is_v7 else 1          # v7x has 2 TensorCores per chip
    mxu_align = 128 if is_v5e else 256  # v5e: 4x128x128 MXU; v6e/v7x: 2x256x256
    return vmem_bytes, num_tc, mxu_align


# ---------------------------------------------------------------------------
# Kernels
# ---------------------------------------------------------------------------
def _res_layer_kernel(x_ref, w1_ref, b_ref, w2_ref, o_ref):
    """Weight-resident path: full W1_eff^T / W2^T live in VMEM (single-buffered)."""
    x = x_ref[...]                                            # (tb, Np) f32
    h = jnp.dot(x.astype(jnp.bfloat16), w1_ref[...],
                preferred_element_type=jnp.float32)           # MXU, f32 acc
    h = h + b_ref[...]                                        # (1, Np) broadcast
    h = jnp.maximum(h, NEG_SLOPE * h)                         # LeakyReLU
    y = jnp.dot(h.astype(jnp.bfloat16), w2_ref[...],
                preferred_element_type=jnp.float32)
    o_ref[...] = x + y                                        # Dropout(eval) = id


def _res_layer_kernel_streamed(x_ref, w1_ref, b_ref, w2_ref, o_ref, acc_ref):
    """Weight-streaming path: hidden dim tiled along grid axis 1 (arbitrary)."""
    j = pl.program_id(1)

    @pl.when(j == 0)
    def _():
        acc_ref[...] = jnp.zeros_like(acc_ref)

    x = x_ref[...]                                            # (tb, Np) f32
    h = jnp.dot(x.astype(jnp.bfloat16), w1_ref[...],
                preferred_element_type=jnp.float32)           # (tb, tk)
    h = h + b_ref[...]                                        # (1, tk) broadcast
    h = jnp.maximum(h, NEG_SLOPE * h)
    acc_ref[...] += jnp.dot(h.astype(jnp.bfloat16), w2_ref[...],
                            preferred_element_type=jnp.float32)

    @pl.when(j == pl.num_programs(1) - 1)
    def _():
        o_ref[...] = x + acc_ref[...]


# ---------------------------------------------------------------------------
# Parameter preparation (run ONCE at parameter-load time; weight-stationary).
# ---------------------------------------------------------------------------
def prepare_params(w1, b1, gamma, beta, running_mean, running_var, w2, *, n_pad):
    n = w1.shape[0]
    scale = (gamma / jnp.sqrt(running_var + EPS)).astype(jnp.float32)       # (N,)
    w1t_eff = jnp.transpose(w1).astype(jnp.float32) * scale[None, :]        # (Nin, Nout)
    b_eff = (b1 - running_mean) * scale + beta                              # (N,)
    w2t = jnp.transpose(w2).astype(jnp.float32)

    pad2 = lambda a, r, c: jnp.pad(a, ((0, r - a.shape[0]), (0, c - a.shape[1])))
    # NOTE: if max(scale) is very large (tiny running_var) the bf16 cast of
    # W1_eff amplifies rounding; keep W1_eff in f32 in that case.
    w1_p = pad2(w1t_eff, n_pad, n_pad).astype(jnp.bfloat16)
    w2_p = pad2(w2t, n_pad, n_pad).astype(jnp.bfloat16)
    b_p = pad2(b_eff.reshape(1, n).astype(jnp.float32), 1, n_pad)           # f32
    return w1_p, b_p, w2_p


# ---------------------------------------------------------------------------
# pallas_call wrapper
# ---------------------------------------------------------------------------
def _res_layer_call(x, w1_p, b_p, w2_p, *, n_pad, vmem_bytes, num_tc,
                    tb_hint=None):
    B, N = x.shape
    cap = int(vmem_bytes * 0.84)        # leave headroom (~107/128 MiB, ~53/64 MiB)

    # ---- batch tile selection ------------------------------------------------
    b_ceil = _round_up(max(B, 1), 8)
    if tb_hint is not None:
        candidates = [max(8, _round_up(min(tb_hint, b_ceil), 8))]
    else:
        candidates = [t for t in (1024, 512, 256) if t <= b_ceil] or [b_ceil]

    weights_resident = 2 * n_pad * n_pad * 2 + n_pad * 4   # bf16 W1+W2 (1 buf) + bias
    tile_bytes = lambda t: 2 * t * n_pad * 4 * 2           # x + out f32, 2 buffers

    tb = None
    for t in candidates:
        if weights_resident + tile_bytes(t) <= cap:
            tb = t
            break
    streamed = tb is None

    if streamed:
        # Weights do not fit VMEM even single-buffered (v7x-class at large N):
        # stream the hidden dimension in tk-wide blocks.
        tb = min(candidates)
        tk = 128
        for t in (1024, 512, 256, 128):
            if n_pad % t == 0:
                need = (2 * n_pad * t * 2 * 2 + t * 4 * 2
                        + tile_bytes(tb) + tb * n_pad * 4)
                if need <= cap:
                    tk = t
                    break
        est = (2 * n_pad * tk * 2 * 2 + tk * 4 * 2
               + tile_bytes(tb) + tb * n_pad * 4)
    else:
        est = weights_resident + tile_bytes(tb)

    tb = min(tb, b_ceil)
    B_pad = _round_up(B, tb)
    # Only on 2-TC chips (v7x): keep >= 2 batch grid steps so both cores get
    # work on the "parallel" axis.  On 1-TC chips a single bigger tile wins.
    if num_tc >= 2 and B_pad // tb < 2 and B_pad >= 16 and (B_pad // 2) % 8 == 0:
        tb = B_pad // 2
    grid_b = B_pad // tb

    x_p = jnp.pad(x.astype(jnp.float32), ((0, B_pad - B), (0, n_pad - N)))

    vmem_limit = int(min(max(est + (8 << 20), 32 << 20), cap))
    cost = pl.CostEstimate(
        flops=4 * B_pad * n_pad * n_pad,
        transcendentals=0,
        bytes_accessed=2 * B_pad * n_pad * 4 + 2 * n_pad * n_pad * 2 + n_pad * 4)

    if not streamed:
        # Grid-invariant operands single-buffered: constant index_map means
        # double-buffering buys zero overlap but doubles VMEM.
        res_spec = lambda shape: pl.BlockSpec(shape, lambda i: (0, 0),
                                              pipeline_mode=pl.Buffered(1))
        out = pl.pallas_call(
            _res_layer_kernel,
            out_shape=jax.ShapeDtypeStruct((B_pad, n_pad), jnp.float32),
            grid_spec=pltpu.PrefetchScalarGridSpec(
                num_scalar_prefetch=0,
                grid=(grid_b,),
                in_specs=[
                    pl.BlockSpec((tb, n_pad), lambda i: (i, 0)),   # x tile (f32)
                    res_spec((n_pad, n_pad)),                      # W1_eff^T (bf16)
                    res_spec((1, n_pad)),                          # folded bias (f32)
                    res_spec((n_pad, n_pad)),                      # W2^T (bf16)
                ],
                out_specs=pl.BlockSpec((tb, n_pad), lambda i: (i, 0)),
            ),
            compiler_params=pltpu.CompilerParams(
                dimension_semantics=("parallel",),
                vmem_limit_bytes=vmem_limit),
            cost_estimate=cost,
        )(x_p, w1_p, b_p, w2_p)
    else:
        grid_j = n_pad // tk
        out = pl.pallas_call(
            _res_layer_kernel_streamed,
            out_shape=jax.ShapeDtypeStruct((B_pad, n_pad), jnp.float32),
            grid_spec=pltpu.PrefetchScalarGridSpec(
                num_scalar_prefetch=0,
                grid=(grid_b, grid_j),
                in_specs=[
                    pl.BlockSpec((tb, n_pad), lambda i, j: (i, 0)),  # x tile
                    pl.BlockSpec((n_pad, tk), lambda i, j: (0, j)),  # W1 cols
                    pl.BlockSpec((1, tk), lambda i, j: (0, j)),      # bias slice
                    pl.BlockSpec((tk, n_pad), lambda i, j: (j, 0)),  # W2 rows
                ],
                out_specs=pl.BlockSpec((tb, n_pad), lambda i, j: (i, 0)),
                scratch_shapes=[pltpu.VMEM((tb, n_pad), jnp.float32)],
            ),
            compiler_params=pltpu.CompilerParams(
                dimension_semantics=("parallel", "arbitrary"),
                vmem_limit_bytes=vmem_limit),
            cost_estimate=cost,
        )(x_p, w1_p, b_p, w2_p)

    return out[:B, :N]


def make_res_layer(w1, b1, gamma, beta, running_mean, running_var, w2, *,
                   tb=None):
    """Fold/pad/cast the parameters once and return a jitted apply(x) closure."""
    N = w1.shape[0]
    vmem_bytes, num_tc, mxu_align = _tpu_info()
    # Lane-dense 128 minimum; 256-align on v6e/v7x when the feature dim is
    # already above 128 (full 2x256x256 MXU tiles).
    n_pad = _round_up(max(N, 1), 128)
    if mxu_align == 256 and n_pad > 128:
        n_pad = _round_up(n_pad, 256)

    prepared = prepare_params(w1, b1, gamma, beta, running_mean, running_var,
                              w2, n_pad=n_pad)

    def apply(x):
        return _res_layer_call(x, *prepared, n_pad=n_pad,
                               vmem_bytes=vmem_bytes, num_tc=num_tc,
                               tb_hint=tb)

    return jax.jit(apply)


def res_layer(x, w1, b1, gamma, beta, running_mean, running_var, w2, *, tb=None):
    """One-shot convenience wrapper (prefer make_res_layer + reuse)."""
    return make_res_layer(w1, b1, gamma, beta, running_mean, running_var, w2,
                          tb=tb)(x)


# ---------------------------------------------------------------------------
# References
# ---------------------------------------------------------------------------
def res_layer_ref_f32(x, w1, b1, gamma, beta, running_mean, running_var, w2):
    h = x @ w1.T + b1
    h = (h - running_mean) / jnp.sqrt(running_var + EPS) * gamma + beta
    h = jnp.where(h >= 0, h, NEG_SLOPE * h)
    return x + h @ w2.T


def res_layer_ref_bf16(x, w1, b1, gamma, beta, running_mean, running_var, w2):
    scale = gamma / jnp.sqrt(running_var + EPS)
    w1t_eff = (w1.T * scale[None, :]).astype(jnp.bfloat16)
    b_eff = (b1 - running_mean) * scale + beta
    w2t = w2.T.astype(jnp.bfloat16)
    h = jnp.dot(x.astype(jnp.bfloat16), w1t_eff,
                preferred_element_type=jnp.float32) + b_eff
    h = jnp.where(h >= 0, h, NEG_SLOPE * h)
    y = jnp.dot(h.astype(jnp.bfloat16), w2t, preferred_element_type=jnp.float32)
    return x + y


if __name__ == "__main__":
    B, N = 16, 32
    key = jax.random.PRNGKey(0)
    kx, k1, kb1, kg, kbt, km, kv, k2 = jax.random.split(key, 8)

    x = jax.random.normal(kx, (B, N), dtype=jnp.float32)
    bound = 1.0 / jnp.sqrt(jnp.float32(N))
    w1 = jax.random.uniform(k1, (N, N), jnp.float32, -bound, bound)
    b1 = jax.random.uniform(kb1, (N,), jnp.float32, -bound, bound)
    w2 = jax.random.uniform(k2, (N, N), jnp.float32, -bound, bound)
    gamma = 1.0 + 0.1 * jax.random.normal(kg, (N,), jnp.float32)
    beta = 0.1 * jax.random.normal(kbt, (N,), jnp.float32)
    running_mean = 0.1 * jax.random.normal(km, (N,), jnp.float32)
    running_var = jnp.abs(1.0 + 0.1 * jax.random.normal(kv, (N,), jnp.float32))

    out = res_layer(x, w1, b1, gamma, beta, running_mean, running_var, w2)
    out = jax.block_until_ready(out)
    assert out.shape == (B, N)

    ref_bf16 = res_layer_ref_bf16(x, w1, b1, gamma, beta, running_mean,
                                  running_var, w2)
    ref_f32 = res_layer_ref_f32(x, w1, b1, gamma, beta, running_mean,
                                running_var, w2)
    assert jnp.allclose(out, ref_bf16, atol=1e-4, rtol=1e-4), \
        "mismatch vs bf16-matmul JAX reference"
    assert jnp.allclose(out, ref_f32, atol=5e-2, rtol=5e-2), \
        "mismatch vs f32 JAX reference (beyond bf16 rounding budget)"
    print("KERNEL_OK")
</pallas_src>

<mosaic_0001>
module attributes {stable_mosaic.version = 11 : i64} {
  func.func @_res_layer_kernel(%arg0: i32, %arg1: memref<16x128xf32, #tpu.memory_space<vmem>>, %arg2: memref<128x128xbf16, #tpu.memory_space<vmem>>, %arg3: memref<1x128xf32, #tpu.memory_space<vmem>>, %arg4: memref<128x128xbf16, #tpu.memory_space<vmem>>, %arg5: memref<16x128xf32, #tpu.memory_space<vmem>>) attributes {dimension_semantics = [#tpu.dimension_semantics<parallel>], iteration_bounds = array<i64: 1>, scalar_prefetch = 0 : i64, scratch_operands = 0 : i64, tpu.core_type = #tpu.core_type<tc>, window_params = [{transform_indices = @transform_0, window_bounds = array<i64: 16, 128>}, {pipeline_mode = #tpu.pipeline_mode<synchronous>, transform_indices = @transform_1, window_bounds = array<i64: 128, 128>}, {pipeline_mode = #tpu.pipeline_mode<synchronous>, transform_indices = @transform_2, window_bounds = array<i64: 1, 128>}, {pipeline_mode = #tpu.pipeline_mode<synchronous>, transform_indices = @transform_3, window_bounds = array<i64: 128, 128>}, {transform_indices = @transform_4, window_bounds = array<i64: 16, 128>}]} {
    %c0 = arith.constant 0 : index
    %c0_0 = arith.constant 0 : index
    %0 = vector.load %arg1[%c0, %c0_0] : memref<16x128xf32, #tpu.memory_space<vmem>>, vector<16x128xf32>
    %1 = arith.truncf %0 : vector<16x128xf32> to vector<16x128xbf16>
    %c0_1 = arith.constant 0 : index
    %c0_2 = arith.constant 0 : index
    %2 = vector.load %arg2[%c0_1, %c0_2] : memref<128x128xbf16, #tpu.memory_space<vmem>>, vector<128x128xbf16>
    %cst = arith.constant dense<0.000000e+00> : vector<16x128xf32>
    %3 = tpu.matmul %1, %2, %cst {dimension_numbers = #tpu.dot_dimension_numbers<[1], [0], [0], [1], [0, 0, 1, 1], [], []>} : vector<16x128xbf16>, vector<128x128xbf16>, vector<16x128xf32> -> vector<16x128xf32>
    %c0_3 = arith.constant 0 : index
    %c0_4 = arith.constant 0 : index
    %4 = vector.load %arg3[%c0_3, %c0_4] : memref<1x128xf32, #tpu.memory_space<vmem>>, vector<1x128xf32>
    %5 = vector.broadcast %4 : vector<1x128xf32> to vector<16x128xf32>
    %6 = arith.addf %3, %5 : vector<16x128xf32>
    %cst_5 = arith.constant 0.00999999977 : f32
    %7 = vector.broadcast %cst_5 : f32 to vector<16x128xf32>
    %8 = arith.mulf %7, %6 : vector<16x128xf32>
    %9 = arith.maximumf %6, %8 : vector<16x128xf32>
    %10 = arith.truncf %9 : vector<16x128xf32> to vector<16x128xbf16>
    %c0_6 = arith.constant 0 : index
    %c0_7 = arith.constant 0 : index
    %11 = vector.load %arg4[%c0_6, %c0_7] : memref<128x128xbf16, #tpu.memory_space<vmem>>, vector<128x128xbf16>
    %cst_8 = arith.constant dense<0.000000e+00> : vector<16x128xf32>
    %12 = tpu.matmul %10, %11, %cst_8 {dimension_numbers = #tpu.dot_dimension_numbers<[1], [0], [0], [1], [0, 0, 1, 1], [], []>} : vector<16x128xbf16>, vector<128x128xbf16>, vector<16x128xf32> -> vector<16x128xf32>
    %13 = arith.addf %0, %12 : vector<16x128xf32>
    %c0_9 = arith.constant 0 : index
    %c0_10 = arith.constant 0 : index
    %14 = vector.load %arg5[%c0_9, %c0_10] : memref<16x128xf32, #tpu.memory_space<vmem>>, vector<16x128xf32>
    tpu.vector_store %arg5[%c0_9, %c0_10], %13 {strides = array<i32>} : memref<16x128xf32, #tpu.memory_space<vmem>>, vector<16x128xf32>,
    return
  }
  func.func @transform_0(%arg0: i32) -> (i32, i32) {
    %c0_i32 = arith.constant 0 : i32
    %c0_i32_0 = arith.constant 0 : i32
    return %arg0, %c0_i32 : i32, i32
  }
  func.func @transform_1(%arg0: i32) -> (i32, i32) {
    %c0_i32 = arith.constant 0 : i32
    %c0_i32_0 = arith.constant 0 : i32
    %c0_i32_1 = arith.constant 0 : i32
    return %c0_i32, %c0_i32_0 : i32, i32
  }
  func.func @transform_2(%arg0: i32) -> (i32, i32) {
    %c0_i32 = arith.constant 0 : i32
    %c0_i32_0 = arith.constant 0 : i32
    %c0_i32_1 = arith.constant 0 : i32
    return %c0_i32, %c0_i32_0 : i32, i32
  }
  func.func @transform_3(%arg0: i32) -> (i32, i32) {
    %c0_i32 = arith.constant 0 : i32
    %c0_i32_0 = arith.constant 0 : i32
    %c0_i32_1 = arith.constant 0 : i32
    return %c0_i32, %c0_i32_0 : i32, i32
  }
  func.func @transform_4(%arg0: i32) -> (i32, i32) {
    %c0_i32 = arith.constant 0 : i32
    %c0_i32_0 = arith.constant 0 : i32
    return %arg0, %c0_i32 : i32, i32
  }
}

</mosaic_0001>

<llo_original>
// kernel: apply.1
$region0: #{apply.1}
  #allocation0 [shape = 'u32[]', space=smem, size = 0x4, offset = 0x4, fixed_abs, tag = 'smem constant byte address 0x4 - core index']
  #allocation1 [shape = 'u32[144,128]{1,0:T(1,128)}', space=vmem, size = 0x12000, scoped, tag = 'internal scratch']
  %s0 = inlined_call_operand.vmem [shape: f32[16,128], index: 0, kind: input, shape index: {}]
  %s1 = inlined_call_operand.hbm [shape: bf16[128,128], index: 1, kind: input, shape index: {}]
  %s2 = inlined_call_operand.vmem [shape: f32[1,128], index: 2, kind: input, shape index: {}]
  %s3 = inlined_call_operand.hbm [shape: bf16[128,128], index: 3, kind: input, shape index: {}]
  %s4 = inlined_call_operand.hbm [shape: f32[16,128], index: 4, kind: output, shape index: {}]
  %s5 = sld [smem:[#allocation0]]
  $region34: #{apply.1} parent=0
    _
  %s7 = ssub.s32 1, %s5
  %s8 = scalar_select 0, %s7, %s5
  $region1: #{apply.1} parent=0
    #allocation2 [shape = 'u8[32768]{0}', space=vmem, size = 0x8000, scoped, tag = 'input window, operand 1, single buffered']
    #allocation3 [shape = 's32[1]{0}', space=sflag, size = 0x4, scoped, tag = 'scoped memory for apply.1']
    #allocation4 [shape = 's32[1]{0}', space=sflag, size = 0x4, scoped, tag = 'scoped memory for apply.1']
    #allocation5 [shape = 'u8[32768]{0}', space=vmem, size = 0x8000, scoped, tag = 'input window, operand 3, single buffered']
    #allocation6 [shape = 's32[1]{0}', space=sflag, size = 0x4, scoped, tag = 'scoped memory for apply.1']
    #allocation7 [shape = 'u8[8192]{0}', space=vmem, size = 0x2000, scoped, tag = 'output window, operand 0, single buffered']
    %9 = vsyncpa [#allocation3], 0
    %10 = vsyncpa [#allocation6], 0
    %11 = vsyncpa [#allocation4], 0
    // Predicated region
    $region2: #{apply.1} parent=1 // pred_check
      _
    $region3: #{apply.1} parent=1 // pred_check_branch
      %13 = sbr.rel (0) target = $region5
    $region4: #{apply.1} parent=1 // pred_region
      _
    $region5: #{apply.1} parent=1 // pred_fallthru
      _
    // Predicated region
    $region6: #{apply.1} parent=1 // pred_check
      _
    $region7: #{apply.1} parent=1 // pred_check_branch
      %15 = sbr.rel (0) target = $region9
    $region8: #{apply.1} parent=1 // pred_region
      %s17 = ssub.s32 1024, 1024
      %18 = vsyncadd [#allocation3], %s17
      %s19 = sshll.u32 [#allocation2], 4
      %s20 = int_to_ptr.vmem [resolvable:$true] %s19
      %25 = dma.hbm_to_vmem [thread:$0]  %s1, 1024, %s20, [#allocation3], 64, 64, 4
    $region9: #{apply.1} parent=1 // pred_fallthru
      _
    // Predicated region
    $region10: #{apply.1} parent=1 // pred_check
      _
    $region11: #{apply.1} parent=1 // pred_check_branch
      %27 = sbr.rel (0) target = $region13
    $region12: #{apply.1} parent=1 // pred_region
      _
    $region13: #{apply.1} parent=1 // pred_fallthru
      _
    // Predicated region
    $region14: #{apply.1} parent=1 // pred_check
      _
    $region15: #{apply.1} parent=1 // pred_check_branch
      %29 = sbr.rel (0) target = $region17
    $region16: #{apply.1} parent=1 // pred_region
      %s31 = ssub.s32 1024, 1024
      %32 = vsyncadd [#allocation6], %s31
      %s33 = sshll.u32 [#allocation5], 4
      %s34 = int_to_ptr.vmem [resolvable:$true] %s33
      %39 = dma.hbm_to_vmem [thread:$0]  %s3, 1024, %s34, [#allocation6], 64, 64, 4
    $region17: #{apply.1} parent=1 // pred_fallthru
      _
    // Predicated region
    $region18: #{apply.1} parent=1 // pred_check
      _
    $region19: #{apply.1} parent=1 // pred_check_branch
      %41 = sbr.rel (0) target = $region21
    $region20: #{apply.1} parent=1 // pred_region
      %42 = dma.done [#allocation3], 1024
    $region21: #{apply.1} parent=1 // pred_fallthru
      _
    // Predicated region
    $region22: #{apply.1} parent=1 // pred_check
      _
    $region23: #{apply.1} parent=1 // pred_check_branch
      %44 = sbr.rel (0) target = $region25
    $region24: #{apply.1} parent=1 // pred_region
      %45 = dma.done [#allocation6], 1024
    $region25: #{apply.1} parent=1 // pred_fallthru
      _
    %v47 = vld [vmem:[%s0] sm:$0xff]
    %v48 = vld [vmem:[%s0 + $0x8] sm:$0xff]
    %v49 = vpack.c.bf16 %v48, %v47
    %v50 = vld [vmem:[#allocation2] sm:$0xf]
    %v51 = vld [vmem:[#allocation2 + $0x4] sm:$0xf]
    %v52 = vld [vmem:[#allocation2 + $0x8] sm:$0xf]
    %v53 = vld [vmem:[#allocation2 + $0xc] sm:$0xf]
    %v54 = vld [vmem:[#allocation2 + $0x10] sm:$0xf]
    %v55 = vld [vmem:[#allocation2 + $0x14] sm:$0xf]
    %v56 = vld [vmem:[#allocation2 + $0x18] sm:$0xf]
    %v57 = vld [vmem:[#allocation2 + $0x1c] sm:$0xf]
    %v58 = vld [vmem:[#allocation2 + $0x20] sm:$0xf]
    %v59 = vld [vmem:[#allocation2 + $0x24] sm:$0xf]
    %v60 = vld [vmem:[#allocation2 + $0x28] sm:$0xf]
    %v61 = vld [vmem:[#allocation2 + $0x2c] sm:$0xf]
    %v62 = vld [vmem:[#allocation2 + $0x30] sm:$0xf]
    %v63 = vld [vmem:[#allocation2 + $0x34] sm:$0xf]
    %v64 = vld [vmem:[#allocation2 + $0x38] sm:$0xf]
    %v65 = vld [vmem:[#allocation2 + $0x3c] sm:$0xf]
    %v66 = vld [vmem:[%s2] sm:$0x1]
    %v68 = vlaneseq
    %v69 = vshrl.u32 %v68, 7
    %v70 = vsub.s32 0, %v69
    %v71 = vrot.slane %v66, %v70
    %v89 = vunpack.c.l.b16 %v50
    %v90 = vunpack.c.l.b16 %v51
    %v91 = vunpack.c.l.b16 %v52
    %v92 = vunpack.c.l.b16 %v53
    %v93 = vunpack.c.l.b16 %v54
    %v94 = vunpack.c.l.b16 %v55
    %v95 = vunpack.c.l.b16 %v56
    %v96 = vunpack.c.l.b16 %v57
    %v97 = vunpack.c.l.b16 %v58
    %v98 = vunpack.c.l.b16 %v59
    %v99 = vunpack.c.l.b16 %v60
    %v100 = vunpack.c.l.b16 %v61
    %v101 = vunpack.c.l.b16 %v62
    %v102 = vunpack.c.l.b16 %v63
    %v103 = vunpack.c.l.b16 %v64
    %v104 = vunpack.c.l.b16 %v65
    %v105 = vpack.c.b16 %v90, %v89
    %v106 = vpack.c.b16 %v92, %v91
    %v107 = vpack.c.b16 %v94, %v93
    %v108 = vpack.c.b16 %v96, %v95
    %v109 = vpack.c.b16 %v98, %v97
    %v110 = vpack.c.b16 %v100, %v99
    %v111 = vpack.c.b16 %v102, %v101
    %v112 = vpack.c.b16 %v104, %v103
    %121 = vmatprep.subr.bf16.mxu0 0
    %122 = vmatpush1.bf16.msra.mxu0 %v105
    %123 = vmatprep.subr.bf16.mxu0 0
    %124 = vmatpush1.bf16.msra.mxu0 %v106
    %125 = vmatprep.subr.bf16.mxu0 0
    %126 = vmatpush1.bf16.msra.mxu0 %v107
    %127 = vmatprep.subr.bf16.mxu0 0
    %128 = vmatpush1.bf16.msra.mxu0 %v108
    %129 = vmatprep.subr.bf16.mxu0 0
    %130 = vmatpush1.bf16.msra.mxu0 %v109
    %131 = vmatprep.subr.bf16.mxu0 0
    %132 = vmatpush1.bf16.msra.mxu0 %v110
    %133 = vmatprep.subr.bf16.mxu0 0
    %134 = vmatpush1.bf16.msra.mxu0 %v111
    %135 = vmatprep.subr.bf16.mxu0 0
    %136 = vmatpush1.bf16.msra.mxu0 %v112
    %137 = vmatprep.subr.bf16.mxu0 0
    %138 = vmatpush1.bf16.msra.mxu0 0
    %139 = vmatprep.subr.bf16.mxu0 0
    %140 = vmatpush1.bf16.msra.mxu0 0
    %141 = vmatprep.subr.bf16.mxu0 0
    %142 = vmatpush1.bf16.msra.mxu0 0
    %143 = vmatprep.subr.bf16.mxu0 0
    %144 = vmatpush1.bf16.msra.mxu0 0
    %145 = vmatprep.subr.bf16.mxu0 0
    %146 = vmatpush1.bf16.msra.mxu0 0
    %147 = vmatprep.subr.bf16.mxu0 0
    %148 = vmatpush1.bf16.msra.mxu0 0
    %149 = vmatprep.subr.bf16.mxu0 0
    %150 = vmatpush1.bf16.msra.mxu0 0
    %151 = vmatprep.subr.bf16.mxu0 0
    %152 = vmatpush1.bf16.msra.mxu0 0
    %153 = vmatprep.mubr.bf16.mxu0 0
    %154 = vmatmul.mubr.bf16.gmra.mrb[0].mxu0 %v49
    %v155 = vpop.f32.mrb[0].mxu0
    %v156 = vadd.f32 %v71, %v155
    %v157 = vpop.f32.mrb[0].mxu0
    %v158 = vpop.f32.mrb[0].mxu0
    %v159 = vadd.f32 %v71, %v158
    %v160 = vpop.f32.mrb[0].mxu0
    %161 = vdwg.mxu0
    %v162 = vmul.f32 %v156, 0.01
    %v163 = vmul.f32 %v159, 0.01
    %v164 = vmax.f32 %v156, %v162
    %v165 = vmax.f32 %v159, %v163
    %v166 = vpack.c.bf16 %v165, %v164
    %v167 = vld [vmem:[#allocation5] sm:$0xf]
    %v168 = vld [vmem:[#allocation5 + $0x4] sm:$0xf]
    %v169 = vld [vmem:[#allocation5 + $0x8] sm:$0xf]
    %v170 = vld [vmem:[#allocation5 + $0xc] sm:$0xf]
    %v171 = vld [vmem:[#allocation5 + $0x10] sm:$0xf]
    %v172 = vld [vmem:[#allocation5 + $0x14] sm:$0xf]
    %v173 = vld [vmem:[#allocation5 + $0x18] sm:$0xf]
    %v174 = vld [vmem:[#allocation5 + $0x1c] sm:$0xf]
    %v175 = vld [vmem:[#allocation5 + $0x20] sm:$0xf]
    %v176 = vld [vmem:[#allocation5 + $0x24] sm:$0xf]
    %v177 = vld [vmem:[#allocation5 + $0x28] sm:$0xf]
    %v178 = vld [vmem:[#allocation5 + $0x2c] sm:$0xf]
    %v179 = vld [vmem:[#allocation5 + $0x30] sm:$0xf]
    %v180 = vld [vmem:[#allocation5 + $0x34] sm:$0xf]
    %v181 = vld [vmem:[#allocation5 + $0x38] sm:$0xf]
    %v182 = vld [vmem:[#allocation5 + $0x3c] sm:$0xf]
    %v199 = vunpack.c.l.b16 %v167
    %v200 = vunpack.c.l.b16 %v168
    %v201 = vunpack.c.l.b16 %v169
    %v202 = vunpack.c.l.b16 %v170
    %v203 = vunpack.c.l.b16 %v171
    %v204 = vunpack.c.l.b16 %v172
    %v205 = vunpack.c.l.b16 %v173
    %v206 = vunpack.c.l.b16 %v174
    %v207 = vunpack.c.l.b16 %v175
    %v208 = vunpack.c.l.b16 %v176
    %v209 = vunpack.c.l.b16 %v177
    %v210 = vunpack.c.l.b16 %v178
    %v211 = vunpack.c.l.b16 %v179
    %v212 = vunpack.c.l.b16 %v180
    %v213 = vunpack.c.l.b16 %v181
    %v214 = vunpack.c.l.b16 %v182
    %v215 = vpack.c.b16 %v200, %v199
    %v216 = vpack.c.b16 %v202, %v201
    %v217 = vpack.c.b16 %v204, %v203
    %v218 = vpack.c.b16 %v206, %v205
    %v219 = vpack.c.b16 %v208, %v207
    %v220 = vpack.c.b16 %v210, %v209
    %v221 = vpack.c.b16 %v212, %v211
    %v222 = vpack.c.b16 %v214, %v213
    %231 = vmatprep.subr.bf16.mxu0 0
    %232 = vmatpush1.bf16.msra.mxu0 %v215
    %233 = vmatprep.subr.bf16.mxu0 0
    %234 = vmatpush1.bf16.msra.mxu0 %v216
    %235 = vmatprep.subr.bf16.mxu0 0
    %236 = vmatpush1.bf16.msra.mxu0 %v217
    %237 = vmatprep.subr.bf16.mxu0 0
    %238 = vmatpush1.bf16.msra.mxu0 %v218
    %239 = vmatprep.subr.bf16.mxu0 0
    %240 = vmatpush1.bf16.msra.mxu0 %v219
    %241 = vmatprep.subr.bf16.mxu0 0
    %242 = vmatpush1.bf16.msra.mxu0 %v220
    %243 = vmatprep.subr.bf16.mxu0 0
    %244 = vmatpush1.bf16.msra.mxu0 %v221
    %245 = vmatprep.subr.bf16.mxu0 0
    %246 = vmatpush1.bf16.msra.mxu0 %v222
    %247 = vmatprep.subr.bf16.mxu0 0
    %248 = vmatpush1.bf16.msra.mxu0 0
    %249 = vmatprep.subr.bf16.mxu0 0
    %250 = vmatpush1.bf16.msra.mxu0 0
    %251 = vmatprep.subr.bf16.mxu0 0
    %252 = vmatpush1.bf16.msra.mxu0 0
    %253 = vmatprep.subr.bf16.mxu0 0
    %254 = vmatpush1.bf16.msra.mxu0 0
    %255 = vmatprep.subr.bf16.mxu0 0
    %256 = vmatpush1.bf16.msra.mxu0 0
    %257 = vmatprep.subr.bf16.mxu0 0
    %258 = vmatpush1.bf16.msra.mxu0 0
    %259 = vmatprep.subr.bf16.mxu0 0
    %260 = vmatpush1.bf16.msra.mxu0 0
    %261 = vmatprep.subr.bf16.mxu0 0
    %262 = vmatpush1.bf16.msra.mxu0 0
    %263 = vmatprep.mubr.bf16.mxu0 0
    %264 = vmatmul.mubr.bf16.gmra.mrb[0].mxu0 %v166
    %v265 = vpop.f32.mrb[0].mxu0
    %v266 = vadd.f32 0.0, %v265
    %v267 = vpop.f32.mrb[0].mxu0
    %v268 = vpop.f32.mrb[0].mxu0
    %v269 = vadd.f32 0.0, %v268
    %v270 = vpop.f32.mrb[0].mxu0
    %271 = vdwg.mxu0
    %v272 = vadd.f32 %v47, %v266
    %v273 = vadd.f32 %v48, %v269
    %274 = vst [vmem:[#allocation7] sm:$0xff] %v272
    %275 = vst [vmem:[#allocation7 + $0x8] sm:$0xff] %v273
    // Predicated region
    $region26: #{apply.1} parent=1 // pred_check
      _
    $region27: #{apply.1} parent=1 // pred_check_branch
      %277 = sbr.rel (0) target = $region29
    $region28: #{apply.1} parent=1 // pred_region
      %s279 = ssub.s32 256, 256
      %280 = vsyncadd [#allocation4], %s279
      %s281 = sshll.u32 [#allocation7], 4
      %s282 = int_to_ptr.vmem [resolvable:$true] %s281
      %287 = dma.vmem_to_hbm [thread:$0]  %s282, 256, %s4, [#allocation4], 128, 128, 8
    $region29: #{apply.1} parent=1 // pred_fallthru
      _
    // Predicated region
    $region30: #{apply.1} parent=1 // pred_check
      _
    $region31: #{apply.1} parent=1 // pred_check_branch
      %289 = sbr.rel (0) target = $region33
    $region32: #{apply.1} parent=1 // pred_region
      %290 = dma.done [#allocation4], 256
    $region33: #{apply.1} parent=1 // pred_fallthru
      _
    %291 = vsyncpa [#allocation3], 1
    %292 = vsyncpa [#allocation6], 1
    %293 = vsyncpa [#allocation4], 1

</llo_original>
